<compile_context>
chip_gen: v7x
topology: tpu7x:2x2x1
jax: 0.10.0
libtpu: 0.0.40
codegen_flags: <defaults>
</compile_context>

<pallas_src>
import math

import jax
import jax.numpy as jnp
from jax.experimental import pallas as pl
from jax.experimental.pallas import tpu as pltpu


def _round_up(v, m):
    return (v + m - 1) // m * m


def plan_tiles(n_nodes, tm=512, tk=2048):
    """Pick (TM, TK, Np): row tile, reduction tile, padded node count.

    TK is kept large so each bf16 adjacency tile is MiB-scale (HBM-bound, not
    step-overhead-bound).  Np is divisible by both TM and TK, so callers can
    build the adjacency pre-padded (and already bf16) at graph-construction
    time and the kernel wrapper never re-touches the N^2 operand.
    """
    n128 = _round_up(n_nodes, 128)
    TK = min(_round_up(tk, 128), n128)
    # Largest 128-multiple divisor of TK that is <= tm  ->  TM | TK | Np.
    TM = TK
    for cand in range(min(_round_up(tm, 128), TK), 127, -128):
        if TK % cand == 0:
            TM = cand
            break
    Np = _round_up(n_nodes, TK)
    # Megacore (v7x has 2 TensorCores): give the "parallel" row axis >= 2
    # tiles when the graph is big enough to split.
    if Np // TM < 2 and TM >= 256:
        TM //= 2          # still divides Np; sublane alignment (%8) preserved
    return TM, TK, Np


# ---------------------------------------------------------------------------
# Kernel 1: support = x @ W  (tiny; computed once, emitted bf16 so the big
#           aggregation matmul moves 2 bytes/elem on this operand).
# ---------------------------------------------------------------------------
def _support_kernel(x_ref, w_ref, o_ref):
    s = jnp.dot(x_ref[...], w_ref[...], preferred_element_type=jnp.float32)
    o_ref[...] = s.astype(o_ref.dtype)


# ---------------------------------------------------------------------------
# Kernel 2: out = relu(adj @ support + b), tiled over (row-tile i, K-tile k).
#           The f32 output block is resident across the k axis (its index_map
#           ignores k) and is used directly as the accumulator; bias + ReLU
#           only in the k==last epilogue.
# ---------------------------------------------------------------------------
def _make_agg_kernel(tk):
    def kernel(adj_ref, s_ref, b_ref, o_ref):
        k = pl.program_id(1)

        @pl.when(k == 0)
        def _():
            o_ref[...] = jnp.zeros_like(o_ref)

        if s_ref.shape[0] == tk:
            # support streamed per k tile (fallback path)
            s_tile = s_ref[...]
        else:
            # support VMEM-resident (fetched once); slice the current k window
            start = pl.multiple_of(k * tk, tk)
            s_tile = s_ref[pl.ds(start, tk), :]

        # (TM, TK) bf16 @ (TK, Cp) bf16 -> f32 accumulate          [MXU]
        o_ref[...] += jnp.dot(adj_ref[...], s_tile,
                              preferred_element_type=jnp.float32)

        @pl.when(k == pl.num_programs(1) - 1)
        def _():
            o_ref[...] = jnp.maximum(o_ref[...] + b_ref[...], 0.0)   # [VPU]

    return kernel


def dyn_conv_gcn_forward(x, adj, W, b, batch=None, *, tm=512, tk=2048):
    """Pallas-backed DynConv forward (conv='gcn', act='relu', norm=None).

    x:   [N, Cin]  f32 node features
    adj: dense adjacency.  Fast path: already bf16 and pre-padded to (Np, Np)
         where (_, _, Np) = plan_tiles(N, tm, tk) -- build it that way where
         the kNN graph is constructed.  Any other shape/dtype takes a one-off
         pad+cast here (an extra HBM pass over the dominant operand).
    W:   [Cin, Cout] f32,  b: [Cout] f32
    Returns out [N, Cout] f32.  `batch` is accepted for API parity and unused.
    """
    del batch
    N, Cin = x.shape
    Cout = W.shape[1]
    Cp = _round_up(Cout, 128)
    TM, TK, Np = plan_tiles(N, tm, tk)

    if adj.dtype == jnp.bfloat16 and adj.shape == (Np, Np):
        adjp = adj            # zero-copy fast path: no extra pass over N^2
    else:
        # TODO(synk): slow path -- build the adjacency padded & bf16 at graph
        # construction time to avoid this full read+write of the N^2 operand.
        adjp = jnp.pad(adj.astype(jnp.bfloat16),
                       ((0, Np - adj.shape[0]), (0, Np - adj.shape[1])))

    xp = x if Np == N else jnp.pad(x, ((0, Np - N), (0, 0)))
    Wp = W if Cp == Cout else jnp.pad(W, ((0, 0), (0, Cp - Cout)))
    bp = jnp.pad(b.astype(jnp.float32), (0, Cp - Cout)).reshape(1, Cp)

    # ---- support = x @ W  (bf16 output) ----
    support = pl.pallas_call(
        _support_kernel,
        out_shape=jax.ShapeDtypeStruct((Np, Cp), jnp.bfloat16),
        grid=(Np // TM,),
        in_specs=[
            pl.BlockSpec((TM, Cin), lambda i: (i, 0)),   # x row tile
            pl.BlockSpec((Cin, Cp), lambda i: (0, 0)),   # W (whole)
        ],
        out_specs=pl.BlockSpec((TM, Cp), lambda i: (i, 0)),
        compiler_params=pltpu.CompilerParams(
            dimension_semantics=("parallel",)),
    )(xp, Wp)

    # ---- out = relu(adj @ support + b) ----
    adj_tile_b = TM * TK * adjp.dtype.itemsize          # bf16 adjacency tile
    out_tile_b = TM * Cp * 4
    slab_b = Np * Cp * 2
    bias_b = Cp * 4
    resident_need = 2 * adj_tile_b + 2 * slab_b + 2 * out_tile_b + bias_b
    stream_need = 2 * adj_tile_b + 2 * TK * Cp * 2 + 2 * out_tile_b + bias_b

    # Keep the whole bf16 support slab VMEM-resident (fetched once) whenever it
    # fits a conservative budget; otherwise stream it per k tile.  Budget stays
    # well below v7x's 64 MiB/core physical VMEM (v5e/v6e have 128 MiB).
    VMEM_BUDGET = 28 * 1024 * 1024
    support_resident = resident_need <= VMEM_BUDGET
    if support_resident:
        s_spec = pl.BlockSpec((Np, Cp), lambda i, k: (0, 0))
        vmem_need, support_reads = resident_need, 1
    else:
        s_spec = pl.BlockSpec((TK, Cp), lambda i, k: (k, 0))
        vmem_need, support_reads = stream_need, Np // TM

    # Tight, generation-safe VMEM cap: actual need + headroom, clamped <=32 MiB.
    vmem_limit = min(max(int(vmem_need * 1.25) + (1 << 20), 16 * 1024 * 1024),
                     32 * 1024 * 1024)

    flops = 2 * Np * Np * Cp
    bytes_accessed = (Np * Np * adjp.dtype.itemsize      # adj read once (dominant)
                      + support_reads * Np * Cp * 2      # support stream/residency
                      + Np * Cp * 4                      # f32 output write
                      + bias_b)

    out = pl.pallas_call(
        _make_agg_kernel(TK),
        out_shape=jax.ShapeDtypeStruct((Np, Cp), jnp.float32),
        grid=(Np // TM, Np // TK),                        # reduction axis last
        in_specs=[
            pl.BlockSpec((TM, TK), lambda i, k: (i, k)),  # adj tile
            s_spec,                                       # support (resident/stream)
            pl.BlockSpec((1, Cp), lambda i, k: (0, 0)),   # bias
        ],
        out_specs=pl.BlockSpec((TM, Cp), lambda i, k: (i, 0)),
        compiler_params=pltpu.CompilerParams(
            dimension_semantics=("parallel", "arbitrary"),
            vmem_limit_bytes=vmem_limit),
        cost_estimate=pl.CostEstimate(
            flops=flops, transcendentals=0, bytes_accessed=bytes_accessed),
    )(adjp, support, bp)

    return out[:N, :Cout]


def init_params(key, in_channels, out_channels):
    """Match GraphConvolution.reset_parameters: uniform(-stdv, stdv), stdv=1/sqrt(out)."""
    stdv = 1.0 / math.sqrt(out_channels)
    kw, kb = jax.random.split(key)
    W = jax.random.uniform(kw, (in_channels, out_channels), jnp.float32, -stdv, stdv)
    b = jax.random.uniform(kb, (out_channels,), jnp.float32, -stdv, stdv)
    return W, b


if __name__ == "__main__":
    key = jax.random.PRNGKey(0)
    k_x, k_adj, k_p = jax.random.split(key, 3)

    N = 16        # number of graph nodes
    C = 32        # channels (in == out for this block)

    x = jax.random.normal(k_x, (N, C), jnp.float32)
    W, b = init_params(k_p, C, C)

    # ---- "graph construction": build the dense adjacency directly at the
    # padded size and in bf16, so the kernel wrapper takes the zero-copy fast
    # path (no extra HBM pass over the N^2 operand). ----
    _, _, Np = plan_tiles(N)
    logits = jax.random.uniform(k_adj, (N, N), jnp.float32)
    adj_bin = (logits > 0.5).astype(jnp.float32)
    adj_bin = jnp.maximum(adj_bin, adj_bin.T) + jnp.eye(N, dtype=jnp.float32)
    adj_small = (adj_bin / jnp.sum(adj_bin, axis=1, keepdims=True)).astype(jnp.bfloat16)
    adj = jnp.zeros((Np, Np), jnp.bfloat16).at[:N, :N].set(adj_small)

    out = dyn_conv_gcn_forward(x, adj, W, b, batch=None)
    out = jax.block_until_ready(out)
    assert out.shape == (N, C)

    # Reference mirroring the kernel's math (bf16 adj & support operands,
    # f32 accumulation / epilogue).  NOTE: bf16 adjacency is an intentional
    # precision tradeoff vs the exact-f32 PyTorch spmm.
    support_ref = jnp.dot(x, W, preferred_element_type=jnp.float32).astype(jnp.bfloat16)
    ref = jnp.maximum(
        jnp.dot(adj_small, support_ref, preferred_element_type=jnp.float32) + b, 0.0)
    assert jnp.allclose(out, ref, atol=1e-2, rtol=1e-2), "mismatch vs reference"

    print("KERNEL_OK")
</pallas_src>

<mosaic_0001>
module attributes {stable_mosaic.version = 11 : i64} {
  func.func @_support_kernel(%arg0: i32, %arg1: memref<128x32xf32, #tpu.memory_space<vmem>>, %arg2: memref<32x128xf32, #tpu.memory_space<vmem>>, %arg3: memref<128x128xbf16, #tpu.memory_space<vmem>>) attributes {dimension_semantics = [#tpu.dimension_semantics<parallel>], iteration_bounds = array<i64: 1>, scalar_prefetch = 0 : i64, scratch_operands = 0 : i64, tpu.core_type = #tpu.core_type<tc>, window_params = [{transform_indices = @transform_0, window_bounds = array<i64: 128, 32>}, {pipeline_mode = #tpu.pipeline_mode<synchronous>, transform_indices = @transform_1, window_bounds = array<i64: 32, 128>}, {transform_indices = @transform_2, window_bounds = array<i64: 128, 128>}]} {
    %c0 = arith.constant 0 : index
    %c0_0 = arith.constant 0 : index
    %0 = vector.load %arg1[%c0, %c0_0] : memref<128x32xf32, #tpu.memory_space<vmem>>, vector<128x32xf32>
    %c0_1 = arith.constant 0 : index
    %c0_2 = arith.constant 0 : index
    %1 = vector.load %arg2[%c0_1, %c0_2] : memref<32x128xf32, #tpu.memory_space<vmem>>, vector<32x128xf32>
    %cst = arith.constant dense<0.000000e+00> : vector<128x128xf32>
    %2 = tpu.matmul %0, %1, %cst {dimension_numbers = #tpu.dot_dimension_numbers<[1], [0], [0], [1], [0, 0, 1, 1], [], []>} : vector<128x32xf32>, vector<32x128xf32>, vector<128x128xf32> -> vector<128x128xf32>
    %3 = arith.truncf %2 : vector<128x128xf32> to vector<128x128xbf16>
    %c0_3 = arith.constant 0 : index
    %c0_4 = arith.constant 0 : index
    %4 = vector.load %arg3[%c0_3, %c0_4] : memref<128x128xbf16, #tpu.memory_space<vmem>>, vector<128x128xbf16>
    tpu.vector_store %arg3[%c0_3, %c0_4], %3 {strides = array<i32>} : memref<128x128xbf16, #tpu.memory_space<vmem>>, vector<128x128xbf16>,
    return
  }
  func.func @transform_0(%arg0: i32) -> (i32, i32) {
    %c0_i32 = arith.constant 0 : i32
    %c0_i32_0 = arith.constant 0 : i32
    return %arg0, %c0_i32 : i32, i32
  }
  func.func @transform_1(%arg0: i32) -> (i32, i32) {
    %c0_i32 = arith.constant 0 : i32
    %c0_i32_0 = arith.constant 0 : i32
    %c0_i32_1 = arith.constant 0 : i32
    return %c0_i32, %c0_i32_0 : i32, i32
  }
  func.func @transform_2(%arg0: i32) -> (i32, i32) {
    %c0_i32 = arith.constant 0 : i32
    %c0_i32_0 = arith.constant 0 : i32
    return %arg0, %c0_i32 : i32, i32
  }
}

</mosaic_0001>

<llo_original>
// kernel: tpu_custom_call.1
$region0: #{tpu_custom_call.1}
  #allocation0 [shape = 'u32[]', space=smem, size = 0x4, offset = 0x4, fixed_abs, tag = 'smem constant byte address 0x4 - core index']
  #allocation1 [shape = 'u32[144,128]{1,0:T(1,128)}', space=vmem, size = 0x12000, scoped, tag = 'internal scratch']
  %s0 = inlined_call_operand.vmem [shape: f32[128,32], index: 0, kind: input, shape index: {}]
  %s1 = inlined_call_operand.vmem [shape: f32[32,128], index: 1, kind: input, shape index: {}]
  %s2 = inlined_call_operand.hbm [shape: bf16[128,128], index: 2, kind: output, shape index: {}]
  %s3 = sld [smem:[#allocation0]]
  $region18: #{tpu_custom_call.1} parent=0
    _
  %s5 = ssub.s32 1, %s3
  %s6 = scalar_select 0, %s5, %s3
  $region1: #{tpu_custom_call.1} parent=0
    #allocation2 [shape = 'u8[32768]{0}', space=vmem, size = 0x8000, scoped, tag = 'output window, operand 0, single buffered']
    #allocation3 [shape = 's32[1]{0}', space=sflag, size = 0x4, scoped, tag = 'scoped memory for tpu_custom_call.1']
    %7 = vsyncpa [#allocation3], 0
    // Predicated region
    $region2: #{tpu_custom_call.1} parent=1 // pred_check
      _
    $region3: #{tpu_custom_call.1} parent=1 // pred_check_branch
      %9 = sbr.rel (0) target = $region5
    $region4: #{tpu_custom_call.1} parent=1 // pred_region
      _
    $region5: #{tpu_custom_call.1} parent=1 // pred_fallthru
      _
    // Predicated region
    $region6: #{tpu_custom_call.1} parent=1 // pred_check
      _
    $region7: #{tpu_custom_call.1} parent=1 // pred_check_branch
      %11 = sbr.rel (0) target = $region9
    $region8: #{tpu_custom_call.1} parent=1 // pred_region
      _
    $region9: #{tpu_custom_call.1} parent=1 // pred_fallthru
      _
    %v12 = vld [vmem:[%s0] sm:$0xff]
    %v13 = vld [vmem:[%s0 + $0x8] sm:$0xff]
    %v14 = vld [vmem:[%s0 + $0x10] sm:$0xff]
    %v15 = vld [vmem:[%s0 + $0x18] sm:$0xff]
    %v16 = vld [vmem:[%s0 + $0x20] sm:$0xff]
    %v17 = vld [vmem:[%s0 + $0x28] sm:$0xff]
    %v18 = vld [vmem:[%s0 + $0x30] sm:$0xff]
    %v19 = vld [vmem:[%s0 + $0x38] sm:$0xff]
    %v20 = vld [vmem:[%s0 + $0x40] sm:$0xff]
    %v21 = vld [vmem:[%s0 + $0x48] sm:$0xff]
    %v22 = vld [vmem:[%s0 + $0x50] sm:$0xff]
    %v23 = vld [vmem:[%s0 + $0x58] sm:$0xff]
    %v24 = vld [vmem:[%s0 + $0x60] sm:$0xff]
    %v25 = vld [vmem:[%s0 + $0x68] sm:$0xff]
    %v26 = vld [vmem:[%s0 + $0x70] sm:$0xff]
    %v27 = vld [vmem:[%s0 + $0x78] sm:$0xff]
    %v28 = vld [vmem:[%s1] sm:$0xff]
    %v29 = vld [vmem:[%s1 + $0x8] sm:$0xff]
    %v30 = vld [vmem:[%s1 + $0x10] sm:$0xff]
    %v31 = vld [vmem:[%s1 + $0x18] sm:$0xff]
    %vm32 = vcmask 261120
    %v34 = vsel %vm32, %v12, 0
    %v37 = vsel %vm32, %v13, 0
    %v40 = vsel %vm32, %v14, 0
    %v43 = vsel %vm32, %v15, 0
    %v46 = vsel %vm32, %v16, 0
    %v49 = vsel %vm32, %v17, 0
    %v52 = vsel %vm32, %v18, 0
    %v55 = vsel %vm32, %v19, 0
    %v58 = vsel %vm32, %v20, 0
    %v61 = vsel %vm32, %v21, 0
    %v64 = vsel %vm32, %v22, 0
    %v67 = vsel %vm32, %v23, 0
    %v70 = vsel %vm32, %v24, 0
    %v73 = vsel %vm32, %v25, 0
    %v76 = vsel %vm32, %v26, 0
    %v79 = vsel %vm32, %v27, 0
    %81 = vmatprep.subr.mxu0 0.0
    %82 = vmatpush1.msra.mxu0 %v28
    %83 = vmatprep.subr.mxu0 0.0
    %84 = vmatpush1.msra.mxu0 %v29
    %85 = vmatprep.subr.mxu0 0.0
    %86 = vmatpush1.msra.mxu0 %v30
    %87 = vmatprep.subr.mxu0 0.0
    %88 = vmatpush1.msra.mxu0 %v31
    %89 = vmatprep.subr.mxu0 0.0
    %90 = vmatpush1.msra.mxu0 0.0
    %91 = vmatprep.subr.mxu0 0.0
    %92 = vmatpush1.msra.mxu0 0.0
    %93 = vmatprep.subr.mxu0 0.0
    %94 = vmatpush1.msra.mxu0 0.0
    %95 = vmatprep.subr.mxu0 0.0
    %96 = vmatpush1.msra.mxu0 0.0
    %97 = vmatprep.subr.mxu0 0.0
    %98 = vmatpush1.msra.mxu0 0.0
    %99 = vmatprep.subr.mxu0 0.0
    %100 = vmatpush1.msra.mxu0 0.0
    %101 = vmatprep.subr.mxu0 0.0
    %102 = vmatpush1.msra.mxu0 0.0
    %103 = vmatprep.subr.mxu0 0.0
    %104 = vmatpush1.msra.mxu0 0.0
    %105 = vmatprep.subr.mxu0 0.0
    %106 = vmatpush1.msra.mxu0 0.0
    %107 = vmatprep.subr.mxu0 0.0
    %108 = vmatpush1.msra.mxu0 0.0
    %109 = vmatprep.subr.mxu0 0.0
    %110 = vmatpush1.msra.mxu0 0.0
    %111 = vmatprep.subr.mxu0 0.0
    %112 = vmatpush1.msra.mxu0 0.0
    %113 = vmatprep.subr.mxu0 0.0
    %114 = vmatpush1.msra.mxu0 0.0
    %115 = vmatprep.subr.mxu0 0.0
    %116 = vmatpush1.msra.mxu0 0.0
    %117 = vmatprep.subr.mxu0 0.0
    %118 = vmatpush1.msra.mxu0 0.0
    %119 = vmatprep.subr.mxu0 0.0
    %120 = vmatpush1.msra.mxu0 0.0
    %121 = vmatprep.subr.mxu0 0.0
    %122 = vmatpush1.msra.mxu0 0.0
    %123 = vmatprep.subr.mxu0 0.0
    %124 = vmatpush1.msra.mxu0 0.0
    %125 = vmatprep.subr.mxu0 0.0
    %126 = vmatpush1.msra.mxu0 0.0
    %127 = vmatprep.subr.mxu0 0.0
    %128 = vmatpush1.msra.mxu0 0.0
    %129 = vmatprep.subr.mxu0 0.0
    %130 = vmatpush1.msra.mxu0 0.0
    %131 = vmatprep.subr.mxu0 0.0
    %132 = vmatpush1.msra.mxu0 0.0
    %133 = vmatprep.subr.mxu0 0.0
    %134 = vmatpush1.msra.mxu0 0.0
    %135 = vmatprep.subr.mxu0 0.0
    %136 = vmatpush1.msra.mxu0 0.0
    %137 = vmatprep.subr.mxu0 0.0
    %138 = vmatpush1.msra.mxu0 0.0
    %139 = vmatprep.subr.mxu0 0.0
    %140 = vmatpush1.msra.mxu0 0.0
    %141 = vmatprep.subr.mxu0 0.0
    %142 = vmatpush1.msra.mxu0 0.0
    %143 = vmatprep.subr.mxu0 0.0
    %144 = vmatpush1.msra.mxu0 0.0
    %145 = vmatprep.mubr.f32.mxu0 0.0
    %146 = vmatmul.mubr.f32.gmra.mrb[0].mxu0 %v34
    %v147 = vpop.f32.mrb[0].mxu0
    %v148 = vadd.f32 0.0, %v147
    %v149 = vpop.f32.mrb[0].mxu0
    %150 = vmatprep.mubr.f32.mxu0 0.0
    %151 = vmatmul.mubr.f32.gmra.mrb[0].mxu0 %v37
    %v152 = vpop.f32.mrb[0].mxu0
    %v153 = vadd.f32 0.0, %v152
    %v154 = vpop.f32.mrb[0].mxu0
    %155 = vmatprep.mubr.f32.mxu0 0.0
    %156 = vmatmul.mubr.f32.gmra.mrb[0].mxu0 %v40
    %v157 = vpop.f32.mrb[0].mxu0
    %v158 = vadd.f32 0.0, %v157
    %v159 = vpop.f32.mrb[0].mxu0
    %160 = vmatprep.mubr.f32.mxu0 0.0
    %161 = vmatmul.mubr.f32.gmra.mrb[0].mxu0 %v43
    %v162 = vpop.f32.mrb[0].mxu0
    %v163 = vadd.f32 0.0, %v162
    %v164 = vpop.f32.mrb[0].mxu0
    %165 = vmatprep.mubr.f32.mxu0 0.0
    %166 = vmatmul.mubr.f32.gmra.mrb[0].mxu0 %v46
    %v167 = vpop.f32.mrb[0].mxu0
    %v168 = vadd.f32 0.0, %v167
    %v169 = vpop.f32.mrb[0].mxu0
    %170 = vmatprep.mubr.f32.mxu0 0.0
    %171 = vmatmul.mubr.f32.gmra.mrb[0].mxu0 %v49
    %v172 = vpop.f32.mrb[0].mxu0
    %v173 = vadd.f32 0.0, %v172
    %v174 = vpop.f32.mrb[0].mxu0
    %175 = vmatprep.mubr.f32.mxu0 0.0
    %176 = vmatmul.mubr.f32.gmra.mrb[0].mxu0 %v52
    %v177 = vpop.f32.mrb[0].mxu0
    %v178 = vadd.f32 0.0, %v177
    %v179 = vpop.f32.mrb[0].mxu0
    %180 = vmatprep.mubr.f32.mxu0 0.0
    %181 = vmatmul.mubr.f32.gmra.mrb[0].mxu0 %v55
    %v182 = vpop.f32.mrb[0].mxu0
    %v183 = vadd.f32 0.0, %v182
    %v184 = vpop.f32.mrb[0].mxu0
    %185 = vmatprep.mubr.f32.mxu0 0.0
    %186 = vmatmul.mubr.f32.gmra.mrb[0].mxu0 %v58
    %v187 = vpop.f32.mrb[0].mxu0
    %v188 = vadd.f32 0.0, %v187
    %v189 = vpop.f32.mrb[0].mxu0
    %190 = vmatprep.mubr.f32.mxu0 0.0
    %191 = vmatmul.mubr.f32.gmra.mrb[0].mxu0 %v61
    %v192 = vpop.f32.mrb[0].mxu0
    %v193 = vadd.f32 0.0, %v192
    %v194 = vpop.f32.mrb[0].mxu0
    %195 = vmatprep.mubr.f32.mxu0 0.0
    %196 = vmatmul.mubr.f32.gmra.mrb[0].mxu0 %v64
    %v197 = vpop.f32.mrb[0].mxu0
    %v198 = vadd.f32 0.0, %v197
    %v199 = vpop.f32.mrb[0].mxu0
    %200 = vmatprep.mubr.f32.mxu0 0.0
    %201 = vmatmul.mubr.f32.gmra.mrb[0].mxu0 %v67
    %v202 = vpop.f32.mrb[0].mxu0
    %v203 = vadd.f32 0.0, %v202
    %v204 = vpop.f32.mrb[0].mxu0
    %205 = vmatprep.mubr.f32.mxu0 0.0
    %206 = vmatmul.mubr.f32.gmra.mrb[0].mxu0 %v70
    %v207 = vpop.f32.mrb[0].mxu0
    %v208 = vadd.f32 0.0, %v207
    %v209 = vpop.f32.mrb[0].mxu0
    %210 = vmatprep.mubr.f32.mxu0 0.0
    %211 = vmatmul.mubr.f32.gmra.mrb[0].mxu0 %v73
    %v212 = vpop.f32.mrb[0].mxu0
    %v213 = vadd.f32 0.0, %v212
    %v214 = vpop.f32.mrb[0].mxu0
    %215 = vmatprep.mubr.f32.mxu0 0.0
    %216 = vmatmul.mubr.f32.gmra.mrb[0].mxu0 %v76
    %v217 = vpop.f32.mrb[0].mxu0
    %v218 = vadd.f32 0.0, %v217
    %v219 = vpop.f32.mrb[0].mxu0
    %220 = vmatprep.mubr.f32.mxu0 0.0
    %221 = vmatmul.mubr.f32.gmra.mrb[0].mxu0 %v79
    %v222 = vpop.f32.mrb[0].mxu0
    %v223 = vadd.f32 0.0, %v222
    %v224 = vpop.f32.mrb[0].mxu0
    %225 = vdwg.mxu0
    %v226 = vpack.c.bf16 %v153, %v148
    %v227 = vpack.c.bf16 %v163, %v158
    %v228 = vpack.c.bf16 %v173, %v168
    %v229 = vpack.c.bf16 %v183, %v178
    %v230 = vpack.c.bf16 %v193, %v188
    %v231 = vpack.c.bf16 %v203, %v198
    %v232 = vpack.c.bf16 %v213, %v208
    %v233 = vpack.c.bf16 %v223, %v218
    %v242 = vunpack.c.l.b16 %v226
    %v243 = vunpack.c.h.b16 %v226
    %v244 = vunpack.c.l.b16 %v227
    %v245 = vunpack.c.h.b16 %v227
    %v246 = vunpack.c.l.b16 %v228
    %v247 = vunpack.c.h.b16 %v228
    %v248 = vunpack.c.l.b16 %v229
    %v249 = vunpack.c.h.b16 %v229
    %v250 = vunpack.c.l.b16 %v230
    %v251 = vunpack.c.h.b16 %v230
    %v252 = vunpack.c.l.b16 %v231
    %v253 = vunpack.c.h.b16 %v231
    %v254 = vunpack.c.l.b16 %v232
    %v255 = vunpack.c.h.b16 %v232
    %v256 = vunpack.c.l.b16 %v233
    %v257 = vunpack.c.h.b16 %v233
    %v258 = vpack.c.b16 %v242, %v242
    %v259 = vpack.c.b16 %v243, %v243
    %v260 = vpack.c.b16 %v244, %v244
    %v261 = vpack.c.b16 %v245, %v245
    %v262 = vpack.c.b16 %v246, %v246
    %v263 = vpack.c.b16 %v247, %v247
    %v264 = vpack.c.b16 %v248, %v248
    %v265 = vpack.c.b16 %v249, %v249
    %v266 = vpack.c.b16 %v250, %v250
    %v267 = vpack.c.b16 %v251, %v251
    %v268 = vpack.c.b16 %v252, %v252
    %v269 = vpack.c.b16 %v253, %v253
    %v270 = vpack.c.b16 %v254, %v254
    %v271 = vpack.c.b16 %v255, %v255
    %v272 = vpack.c.b16 %v256, %v256
    %v273 = vpack.c.b16 %v257, %v257
    %290 = vst [vmem:[#allocation2] sm:$0xf] %v258
    %291 = vst [vmem:[#allocation2 + $0x4] sm:$0xf] %v259
    %292 = vst [vmem:[#allocation2 + $0x8] sm:$0xf] %v260
    %293 = vst [vmem:[#allocation2 + $0xc] sm:$0xf] %v261
    %294 = vst [vmem:[#allocation2 + $0x10] sm:$0xf] %v262
    %295 = vst [vmem:[#allocation2 + $0x14] sm:$0xf] %v263
    %296 = vst [vmem:[#allocation2 + $0x18] sm:$0xf] %v264
    %297 = vst [vmem:[#allocation2 + $0x1c] sm:$0xf] %v265
    %298 = vst [vmem:[#allocation2 + $0x20] sm:$0xf] %v266
    %299 = vst [vmem:[#allocation2 + $0x24] sm:$0xf] %v267
    %300 = vst [vmem:[#allocation2 + $0x28] sm:$0xf] %v268
    %301 = vst [vmem:[#allocation2 + $0x2c] sm:$0xf] %v269
    %302 = vst [vmem:[#allocation2 + $0x30] sm:$0xf] %v270
    %303 = vst [vmem:[#allocation2 + $0x34] sm:$0xf] %v271
    %304 = vst [vmem:[#allocation2 + $0x38] sm:$0xf] %v272
    %305 = vst [vmem:[#allocation2 + $0x3c] sm:$0xf] %v273
    // Predicated region
    $region10: #{tpu_custom_call.1} parent=1 // pred_check
      _
    $region11: #{tpu_custom_call.1} parent=1 // pred_check_branch
      %307 = sbr.rel (0) target = $region13
    $region12: #{tpu_custom_call.1} parent=1 // pred_region
      %s309 = ssub.s32 1024, 1024
      %310 = vsyncadd [#allocation3], %s309
      %s311 = sshll.u32 [#allocation2], 4
      %s312 = int_to_ptr.vmem [resolvable:$true] %s311
      %317 = dma.vmem_to_hbm [thread:$0]  %s312, 1024, %s2, [#allocation3], 64, 64, 4
    $region13: #{tpu_custom_call.1} parent=1 // pred_fallthru
      _
    // Predicated region
    $region14: #{tpu_custom_call.1} parent=1 // pred_check
      _
    $region15: #{tpu_custom_call.1} parent=1 // pred_check_branch
      %319 = sbr.rel (0) target = $region17
    $region16: #{tpu_custom_call.1} parent=1 // pred_region
      %320 = dma.done [#allocation3], 1024
    $region17: #{tpu_custom_call.1} parent=1 // pred_fallthru
      _
    %321 = vsyncpa [#allocation3], 1

</llo_original>
